<compile_context>
chip_gen: v6e
topology: v6e:2x2x1
jax: 0.10.0
libtpu: 0.0.40
codegen_flags: <defaults>
</compile_context>

<pallas_src>
import jax
import jax.numpy as jnp
from jax.experimental import pallas as pl
from jax.experimental.pallas import tpu as pltpu


def _round_up(n, m):
    return ((n + m - 1) // m) * m


def _pick_tm(b_pad):
    """Pick the batch tile (rows per grid step).

    Big tiles (512-1024 rows) get close to the HBM roofline (per-step overhead
    ~0.35 us would otherwise dominate), but once the batch is large enough we keep
    >= 2 grid steps so dimension_semantics=("parallel",) can shard across the two
    TensorCores on v7x (single-TC v5e/v6e: no downside).
    """
    if b_pad <= 512:
        return b_pad                            # one step; splitting tiny batches is pure overhead
    n_tiles = max(2, pl.cdiv(b_pad, 1024))      # aim for <=~1024-row tiles, >= 2 of them
    return _round_up(pl.cdiv(b_pad, n_tiles), 8)


# ----------------------------------------------------------------------------
# Kernel: fused  (x @ W1') -> +shift -> ReLU -> (@ W2') -> +b2
# ----------------------------------------------------------------------------
def head_kernel(x_ref, w1_ref, shift_ref, w2_ref, b2_ref, o_ref):
    # Cast the f32 activation tile to bf16 in-register (cheap VPU op, no extra HBM).
    x = x_ref[...].astype(w1_ref.dtype)
    # Linear1 (BN scale pre-folded into W1 columns). bf16 operands, f32 accumulation.
    h = jnp.dot(x, w1_ref[...], preferred_element_type=jnp.float32)
    # Folded BatchNorm shift + ReLU, kept in f32 on the VPU (v5e VPU has no bf16).
    h = jnp.maximum(h + shift_ref[...], 0.0)
    # Dropout: identity (eval mode).
    # Linear2 over the lane-padded N (dense MXU feed), + bias. f32 accumulation.
    out = jnp.dot(h.astype(w2_ref.dtype), w2_ref[...],
                  preferred_element_type=jnp.float32) + b2_ref[...]
    o_ref[...] = out.astype(o_ref.dtype)


# ----------------------------------------------------------------------------
# One-time parameter folding (init time -- keep OUT of the per-call hot path).
# ----------------------------------------------------------------------------
def fold_head_params(w1_t, bn_gamma, bn_beta, bn_mean, bn_var, w2_t, b2, *, eps=1e-5):
    """Fold BatchNorm (eval) into the Linear1 weights and lane-pad the output path.

    Returns a dict of kernel-ready constants; call once per model, reuse per forward.
    """
    H = w1_t.shape[1]
    C = w2_t.shape[1]

    # BatchNorm1d (eval) as per-channel affine: y = h*scale + shift.
    scale = bn_gamma.astype(jnp.float32) / jnp.sqrt(bn_var.astype(jnp.float32) + eps)
    shift = (bn_beta.astype(jnp.float32)
             - bn_mean.astype(jnp.float32) * scale).reshape(1, H)            # [1, H] f32

    # Fold BN scale into W1^T columns; bf16 matmul operands (native MXU format).
    w1_folded = (w1_t.astype(jnp.float32) * scale[None, :]).astype(jnp.bfloat16)

    # Lane-densify the output path: pad N of W2^T / b2 to a multiple of 128
    # (exactly 128 for small heads -- never over-pad; unmasked vst on all gens).
    C_pad = _round_up(C, 128)
    w2_p = jnp.zeros((H, C_pad), jnp.float32).at[:, :C].set(w2_t.astype(jnp.float32))
    w2_p = w2_p.astype(jnp.bfloat16)
    b2_p = jnp.zeros((1, C_pad), jnp.float32).at[:, :C].set(b2.astype(jnp.float32))

    return {"w1_folded": w1_folded, "shift": shift,
            "w2_p": w2_p, "b2_p": b2_p, "out_channels": C}


# ----------------------------------------------------------------------------
# Forward (hot path): x [B, emb_dims] f32 -> [B, output_channels]
# ----------------------------------------------------------------------------
def head_forward(x, params, *, out_dtype=jnp.float32):
    w1_folded = params["w1_folded"]
    shift = params["shift"]
    w2_p = params["w2_p"]
    b2_p = params["b2_p"]
    C = params["out_channels"]

    B, E = x.shape
    H = w1_folded.shape[1]
    C_pad = w2_p.shape[1]

    # Batch tiling: pad only when the batch is not tile-aligned (f32 pad, no cast copy).
    TM = _pick_tm(_round_up(B, 8))
    B_pad = _round_up(B, TM)
    x_p = x if B_pad == B else jnp.pad(x, ((0, B_pad - B), (0, 0)))

    # Advisory cost for XLA scheduling around the custom call.
    bytes_accessed = (B_pad * E * x.dtype.itemsize                     # x read
                      + B_pad * C_pad * jnp.dtype(out_dtype).itemsize  # out write
                      + w1_folded.size * 2 + w2_p.size * 2             # bf16 weights
                      + shift.size * 4 + b2_p.size * 4)                # f32 vectors
    cost = pl.CostEstimate(flops=2 * B_pad * (E * H + H * C_pad),
                           transcendentals=0,
                           bytes_accessed=bytes_accessed)

    # Constant-index resident operands: single-buffer them (double-buffering a
    # never-changing block just wastes VMEM, esp. on v7x's 64 MiB).
    resident = pl.Buffered(1)

    out_padded = pl.pallas_call(
        head_kernel,
        out_shape=jax.ShapeDtypeStruct((B_pad, C_pad), out_dtype),
        grid=(B_pad // TM,),
        in_specs=[
            pl.BlockSpec((TM, E), lambda i: (i, 0)),                                   # x tile (f32)
            pl.BlockSpec((E, H), lambda i: (0, 0), pipeline_mode=resident),            # W1' (bf16)
            pl.BlockSpec((1, H), lambda i: (0, 0), pipeline_mode=resident),            # BN shift (f32)
            pl.BlockSpec((H, C_pad), lambda i: (0, 0), pipeline_mode=resident),        # W2' (bf16)
            pl.BlockSpec((1, C_pad), lambda i: (0, 0), pipeline_mode=resident),        # b2 (f32)
        ],
        out_specs=pl.BlockSpec((TM, C_pad), lambda i: (i, 0)),
        compiler_params=pltpu.CompilerParams(
            dimension_semantics=("parallel",),
        ),
        cost_estimate=cost,
    )(x_p, w1_folded, shift, w2_p, b2_p)

    # Slice off batch / lane padding.
    return out_padded[:B, :C]


def reference_forward(x, w1_t, g, b, m, v, w2_t, b2, eps=1e-5):
    h = x @ w1_t
    h = g * (h - m) / jnp.sqrt(v + eps) + b
    h = jnp.maximum(h, 0.0)
    return h @ w2_t + b2


if __name__ == "__main__":
    # Small shapes consistent with the module: emb_dims=32, hidden=512, classes=16.
    B, EMB, HID, OUT = 8, 32, 512, 16

    key = jax.random.PRNGKey(0)
    kx, k1, k2, k3, kg, kb, km, kv = jax.random.split(key, 8)

    x = jax.random.normal(kx, (B, EMB), dtype=jnp.float32)

    # Deterministic synthetic parameters (uniform-ish init like nn.Linear).
    w1_t = jax.random.uniform(k1, (EMB, HID), minval=-1.0, maxval=1.0) / jnp.sqrt(EMB)
    w2_t = jax.random.uniform(k2, (HID, OUT), minval=-1.0, maxval=1.0) / jnp.sqrt(HID)
    b2 = jax.random.uniform(k3, (OUT,), minval=-0.1, maxval=0.1)

    bn_gamma = 1.0 + 0.1 * jax.random.normal(kg, (HID,))
    bn_beta = 0.1 * jax.random.normal(kb, (HID,))
    bn_mean = 0.05 * jax.random.normal(km, (HID,))
    bn_var = jnp.abs(1.0 + 0.1 * jax.random.normal(kv, (HID,)))

    # Fold once (init time), then run the hot path.
    params = fold_head_params(w1_t, bn_gamma, bn_beta, bn_mean, bn_var, w2_t, b2)
    params = jax.tree_util.tree_map(
        lambda a: jax.block_until_ready(a) if isinstance(a, jax.Array) else a, params)

    out = head_forward(x, params)
    out = jax.block_until_ready(out)

    ref = reference_forward(x, w1_t, bn_gamma, bn_beta, bn_mean, bn_var, w2_t, b2)
    assert out.shape == (B, OUT)
    # bf16 matmul operands with f32 accumulation: looser tolerance than pure f32.
    assert jnp.allclose(out, ref, atol=5e-2, rtol=5e-2), (
        "mismatch vs reference: max abs diff = "
        f"{float(jnp.max(jnp.abs(out - ref)))}")

    print("KERNEL_OK")
</pallas_src>

<mosaic_0001>
module attributes {stable_mosaic.version = 11 : i64} {
  func.func @head_kernel(%arg0: i32, %arg1: memref<8x32xf32, #tpu.memory_space<vmem>>, %arg2: memref<32x512xbf16, #tpu.memory_space<vmem>>, %arg3: memref<1x512xf32, #tpu.memory_space<vmem>>, %arg4: memref<512x128xbf16, #tpu.memory_space<vmem>>, %arg5: memref<1x128xf32, #tpu.memory_space<vmem>>, %arg6: memref<8x128xf32, #tpu.memory_space<vmem>>) attributes {dimension_semantics = [#tpu.dimension_semantics<parallel>], iteration_bounds = array<i64: 1>, scalar_prefetch = 0 : i64, scratch_operands = 0 : i64, tpu.core_type = #tpu.core_type<tc>, window_params = [{transform_indices = @transform_0, window_bounds = array<i64: 8, 32>}, {pipeline_mode = #tpu.pipeline_mode<synchronous>, transform_indices = @transform_1, window_bounds = array<i64: 32, 512>}, {pipeline_mode = #tpu.pipeline_mode<synchronous>, transform_indices = @transform_2, window_bounds = array<i64: 1, 512>}, {pipeline_mode = #tpu.pipeline_mode<synchronous>, transform_indices = @transform_3, window_bounds = array<i64: 512, 128>}, {pipeline_mode = #tpu.pipeline_mode<synchronous>, transform_indices = @transform_4, window_bounds = array<i64: 1, 128>}, {transform_indices = @transform_5, window_bounds = array<i64: 8, 128>}]} {
    %c0 = arith.constant 0 : index
    %c0_0 = arith.constant 0 : index
    %0 = vector.load %arg1[%c0, %c0_0] : memref<8x32xf32, #tpu.memory_space<vmem>>, vector<8x32xf32>
    %1 = arith.truncf %0 : vector<8x32xf32> to vector<8x32xbf16>
    %c0_1 = arith.constant 0 : index
    %c0_2 = arith.constant 0 : index
    %2 = vector.load %arg2[%c0_1, %c0_2] : memref<32x512xbf16, #tpu.memory_space<vmem>>, vector<32x512xbf16>
    %cst = arith.constant dense<0.000000e+00> : vector<8x512xf32>
    %3 = tpu.matmul %1, %2, %cst {dimension_numbers = #tpu.dot_dimension_numbers<[1], [0], [0], [1], [0, 0, 1, 1], [], []>} : vector<8x32xbf16>, vector<32x512xbf16>, vector<8x512xf32> -> vector<8x512xf32>
    %c0_3 = arith.constant 0 : index
    %c0_4 = arith.constant 0 : index
    %4 = vector.load %arg3[%c0_3, %c0_4] : memref<1x512xf32, #tpu.memory_space<vmem>>, vector<1x512xf32>
    %5 = vector.broadcast %4 : vector<1x512xf32> to vector<8x512xf32>
    %6 = arith.addf %3, %5 : vector<8x512xf32>
    %cst_5 = arith.constant 0.000000e+00 : f32
    %7 = vector.broadcast %cst_5 : f32 to vector<8x512xf32>
    %8 = arith.maximumf %6, %7 : vector<8x512xf32>
    %9 = arith.truncf %8 : vector<8x512xf32> to vector<8x512xbf16>
    %c0_6 = arith.constant 0 : index
    %c0_7 = arith.constant 0 : index
    %10 = vector.load %arg4[%c0_6, %c0_7] : memref<512x128xbf16, #tpu.memory_space<vmem>>, vector<512x128xbf16>
    %cst_8 = arith.constant dense<0.000000e+00> : vector<8x128xf32>
    %11 = tpu.matmul %9, %10, %cst_8 {dimension_numbers = #tpu.dot_dimension_numbers<[1], [0], [0], [1], [0, 0, 1, 1], [], []>} : vector<8x512xbf16>, vector<512x128xbf16>, vector<8x128xf32> -> vector<8x128xf32>
    %c0_9 = arith.constant 0 : index
    %c0_10 = arith.constant 0 : index
    %12 = vector.load %arg5[%c0_9, %c0_10] : memref<1x128xf32, #tpu.memory_space<vmem>>, vector<1x128xf32>
    %13 = vector.broadcast %12 : vector<1x128xf32> to vector<8x128xf32>
    %14 = arith.addf %11, %13 : vector<8x128xf32>
    %c0_11 = arith.constant 0 : index
    %c0_12 = arith.constant 0 : index
    %15 = vector.load %arg6[%c0_11, %c0_12] : memref<8x128xf32, #tpu.memory_space<vmem>>, vector<8x128xf32>
    tpu.vector_store %arg6[%c0_11, %c0_12], %14 {strides = array<i32>} : memref<8x128xf32, #tpu.memory_space<vmem>>, vector<8x128xf32>,
    return
  }
  func.func @transform_0(%arg0: i32) -> (i32, i32) {
    %c0_i32 = arith.constant 0 : i32
    %c0_i32_0 = arith.constant 0 : i32
    return %arg0, %c0_i32 : i32, i32
  }
  func.func @transform_1(%arg0: i32) -> (i32, i32) {
    %c0_i32 = arith.constant 0 : i32
    %c0_i32_0 = arith.constant 0 : i32
    %c0_i32_1 = arith.constant 0 : i32
    return %c0_i32, %c0_i32_0 : i32, i32
  }
  func.func @transform_2(%arg0: i32) -> (i32, i32) {
    %c0_i32 = arith.constant 0 : i32
    %c0_i32_0 = arith.constant 0 : i32
    %c0_i32_1 = arith.constant 0 : i32
    return %c0_i32, %c0_i32_0 : i32, i32
  }
  func.func @transform_3(%arg0: i32) -> (i32, i32) {
    %c0_i32 = arith.constant 0 : i32
    %c0_i32_0 = arith.constant 0 : i32
    %c0_i32_1 = arith.constant 0 : i32
    return %c0_i32, %c0_i32_0 : i32, i32
  }
  func.func @transform_4(%arg0: i32) -> (i32, i32) {
    %c0_i32 = arith.constant 0 : i32
    %c0_i32_0 = arith.constant 0 : i32
    %c0_i32_1 = arith.constant 0 : i32
    return %c0_i32, %c0_i32_0 : i32, i32
  }
  func.func @transform_5(%arg0: i32) -> (i32, i32) {
    %c0_i32 = arith.constant 0 : i32
    %c0_i32_0 = arith.constant 0 : i32
    return %arg0, %c0_i32 : i32, i32
  }
}

</mosaic_0001>

<llo_original>
// kernel: tpu_custom_call.1
$region0: #{tpu_custom_call.1}
  #allocation0 [shape = 'u32[]', space=smem, size = 0x4, offset = 0x4, fixed_abs, tag = 'smem constant byte address 0x4 - core index']
  #allocation1 [shape = 'u32[144,128]{1,0:T(1,128)}', space=vmem, size = 0x12000, scoped, tag = 'internal scratch']
  %s0 = inlined_call_operand.hbm [shape: f32[8,32], index: 0, kind: input, shape index: {}]
  %s1 = inlined_call_operand.hbm [shape: bf16[32,512], index: 1, kind: input, shape index: {}]
  %s2 = inlined_call_operand.hbm [shape: f32[1,512], index: 2, kind: input, shape index: {}]
  %s3 = inlined_call_operand.hbm [shape: bf16[512,128], index: 3, kind: input, shape index: {}]
  %s4 = inlined_call_operand.vmem [shape: f32[1,128], index: 4, kind: input, shape index: {}]
  %s5 = inlined_call_operand.hbm [shape: f32[8,128], index: 5, kind: output, shape index: {}]
  %s6 = sld [smem:[#allocation0]]
  $region46: #{tpu_custom_call.1} parent=0
    _
  %s8 = ssub.s32 1, %s6
  %s9 = scalar_select 0, %s8, %s6
  $region1: #{tpu_custom_call.1} parent=0
    #allocation2 [shape = 'u8[4096]{0}', space=vmem, size = 0x1000, scoped, tag = 'input window, operand 0, single buffered']
    #allocation3 [shape = 's32[1]{0}', space=sflag, size = 0x4, scoped, tag = 'scoped memory for tpu_custom_call.1']
    #allocation4 [shape = 's32[1]{0}', space=sflag, size = 0x4, scoped, tag = 'scoped memory for tpu_custom_call.1']
    #allocation5 [shape = 'u8[32768]{0}', space=vmem, size = 0x8000, scoped, tag = 'input window, operand 1, single buffered']
    #allocation6 [shape = 's32[1]{0}', space=sflag, size = 0x4, scoped, tag = 'scoped memory for tpu_custom_call.1']
    #allocation7 [shape = 'u8[2048]{0}', space=vmem, size = 0x800, scoped, tag = 'input window, operand 2, single buffered']
    #allocation8 [shape = 'u8[131072]{0}', space=vmem, size = 0x20000, scoped, tag = 'input window, operand 3, single buffered']
    #allocation9 [shape = 's32[1]{0}', space=sflag, size = 0x4, scoped, tag = 'scoped memory for tpu_custom_call.1']
    #allocation10 [shape = 'u8[4096]{0}', space=vmem, size = 0x1000, scoped, tag = 'output window, operand 0, single buffered']
    %10 = vsyncpa [#allocation3], 0
    %11 = vsyncpa [#allocation6], 0
    %12 = vsyncpa [#allocation9], 0
    %13 = vsyncpa [#allocation4], 0
    // Predicated region
    $region2: #{tpu_custom_call.1} parent=1 // pred_check
      _
    $region3: #{tpu_custom_call.1} parent=1 // pred_check_branch
      %15 = sbr.rel (0) target = $region5
    $region4: #{tpu_custom_call.1} parent=1 // pred_region
      %s17 = ssub.s32 128, 128
      %18 = vsyncadd [#allocation3], %s17
      %s20 = sshll.u32 [#allocation2], 4
      %s21 = int_to_ptr.vmem [resolvable:$true] %s20
      %23 = dma.hbm_to_vmem [thread:$0]  %s0, 128, %s21, [#allocation3]
    $region5: #{tpu_custom_call.1} parent=1 // pred_fallthru
      _
    // Predicated region
    $region6: #{tpu_custom_call.1} parent=1 // pred_check
      _
    $region7: #{tpu_custom_call.1} parent=1 // pred_check_branch
      %25 = sbr.rel (0) target = $region9
    $region8: #{tpu_custom_call.1} parent=1 // pred_region
      %s27 = ssub.s32 1024, 1024
      %28 = vsyncadd [#allocation6], %s27
      %s29 = sshll.u32 [#allocation5], 4
      %s30 = int_to_ptr.vmem [resolvable:$true] %s29
      %35 = dma.hbm_to_vmem [thread:$0]  %s1, 1024, %s30, [#allocation6], 256, 256, 16
    $region9: #{tpu_custom_call.1} parent=1 // pred_fallthru
      _
    // Predicated region
    $region10: #{tpu_custom_call.1} parent=1 // pred_check
      _
    $region11: #{tpu_custom_call.1} parent=1 // pred_check_branch
      %37 = sbr.rel (0) target = $region13
    $region12: #{tpu_custom_call.1} parent=1 // pred_region
      %s39 = ssub.s32 64, 64
      %40 = vsyncadd [#allocation6], %s39
      %s42 = sshll.u32 [#allocation7], 4
      %s43 = int_to_ptr.vmem [resolvable:$true] %s42
      %45 = dma.hbm_to_vmem [thread:$0]  %s2, 64, %s43, [#allocation6]
    $region13: #{tpu_custom_call.1} parent=1 // pred_fallthru
      _
    // Predicated region
    $region14: #{tpu_custom_call.1} parent=1 // pred_check
      _
    $region15: #{tpu_custom_call.1} parent=1 // pred_check_branch
      %47 = sbr.rel (0) target = $region17
    $region16: #{tpu_custom_call.1} parent=1 // pred_region
      %s49 = ssub.s32 4096, 4096
      %50 = vsyncadd [#allocation9], %s49
      %s51 = sshll.u32 [#allocation8], 4
      %s52 = int_to_ptr.vmem [resolvable:$true] %s51
      %57 = dma.hbm_to_vmem [thread:$0]  %s3, 4096, %s52, [#allocation9], 64, 64, 4
    $region17: #{tpu_custom_call.1} parent=1 // pred_fallthru
      _
    // Predicated region
    $region18: #{tpu_custom_call.1} parent=1 // pred_check
      _
    $region19: #{tpu_custom_call.1} parent=1 // pred_check_branch
      %59 = sbr.rel (0) target = $region21
    $region20: #{tpu_custom_call.1} parent=1 // pred_region
      _
    $region21: #{tpu_custom_call.1} parent=1 // pred_fallthru
      _
    // Predicated region
    $region22: #{tpu_custom_call.1} parent=1 // pred_check
      _
    $region23: #{tpu_custom_call.1} parent=1 // pred_check_branch
      %61 = sbr.rel (0) target = $region25
    $region24: #{tpu_custom_call.1} parent=1 // pred_region
      %62 = dma.done [#allocation3], 128
    $region25: #{tpu_custom_call.1} parent=1 // pred_fallthru
      _
    // Predicated region
    $region26: #{tpu_custom_call.1} parent=1 // pred_check
      _
    $region27: #{tpu_custom_call.1} parent=1 // pred_check_branch
      %64 = sbr.rel (0) target = $region29
    $region28: #{tpu_custom_call.1} parent=1 // pred_region
      %65 = dma.done [#allocation6], 1024
    $region29: #{tpu_custom_call.1} parent=1 // pred_fallthru
      _
    // Predicated region
    $region30: #{tpu_custom_call.1} parent=1 // pred_check
      _
    $region31: #{tpu_custom_call.1} parent=1 // pred_check_branch
      %67 = sbr.rel (0) target = $region33
    $region32: #{tpu_custom_call.1} parent=1 // pred_region
      %68 = dma.done [#allocation6], 64
    $region33: #{tpu_custom_call.1} parent=1 // pred_fallthru
      _
    // Predicated region
    $region34: #{tpu_custom_call.1} parent=1 // pred_check
      _
    $region35: #{tpu_custom_call.1} parent=1 // pred_check_branch
      %70 = sbr.rel (0) target = $region37
    $region36: #{tpu_custom_call.1} parent=1 // pred_region
      %71 = dma.done [#allocation9], 4096
    $region37: #{tpu_custom_call.1} parent=1 // pred_fallthru
      _
    %v73 = vld [vmem:[#allocation2] sm:$0xff]
    %v74 = vpack.c.bf16 %v73, %v73
    %v75 = vld [vmem:[#allocation5] sm:$0xff]
    %v76 = vld [vmem:[#allocation5 + $0x8] sm:$0xff]
    %v77 = vld [vmem:[#allocation5 + $0x10] sm:$0xff]
    %v78 = vld [vmem:[#allocation5 + $0x18] sm:$0xff]
    %v79 = vld [vmem:[#allocation5 + $0x20] sm:$0xff]
    %v80 = vld [vmem:[#allocation5 + $0x28] sm:$0xff]
    %v81 = vld [vmem:[#allocation5 + $0x30] sm:$0xff]
    %v82 = vld [vmem:[#allocation5 + $0x38] sm:$0xff]
    %v83 = vld [vmem:[#allocation7] sm:$0xf]
    %v85 = vlaneseq
    %v86 = vshrl.u32 %v85, 7
    %v87 = vsub.s32 0, %v86
    %v88 = vrot.slane %v83, %v87
    %v89 = vlaneseq
    %v90 = vshrl.u32 %v89, 7
    %v91 = vsub.s32 1, %v90
    %v92 = vrot.slane %v83, %v91
    %v93 = vlaneseq
    %v94 = vshrl.u32 %v93, 7
    %v95 = vsub.s32 2, %v94
    %v96 = vrot.slane %v83, %v95
    %v97 = vlaneseq
    %v98 = vshrl.u32 %v97, 7
    %v99 = vsub.s32 3, %v98
    %v100 = vrot.slane %v83, %v99
    %v113 = vunpack.c.l.b16 %v75
    %v114 = vunpack.c.h.b16 %v75
    %v115 = vunpack.c.l.b16 %v76
    %v116 = vunpack.c.h.b16 %v76
    %v117 = vunpack.c.l.b16 %v77
    %v118 = vunpack.c.h.b16 %v77
    %v119 = vunpack.c.l.b16 %v78
    %v120 = vunpack.c.h.b16 %v78
    %v121 = vunpack.c.l.b16 %v79
    %v122 = vunpack.c.h.b16 %v79
    %v123 = vunpack.c.l.b16 %v80
    %v124 = vunpack.c.h.b16 %v80
    %v125 = vunpack.c.l.b16 %v81
    %v126 = vunpack.c.h.b16 %v81
    %v127 = vunpack.c.l.b16 %v82
    %v128 = vunpack.c.h.b16 %v82
    %v129 = vpack.c.b16 %v117, %v113
    %v130 = vpack.c.b16 %v118, %v114
    %v131 = vpack.c.b16 %v119, %v115
    %v132 = vpack.c.b16 %v120, %v116
    %v133 = vpack.c.b16 %v125, %v121
    %v134 = vpack.c.b16 %v126, %v122
    %v135 = vpack.c.b16 %v127, %v123
    %v136 = vpack.c.b16 %v128, %v124
    %vm145 = vcmask 261120
    %v147 = vsel %vm145, %v74, 0
    %149 = vmatprep.subr.bf16.mxu0 0
    %150 = vmatpush1.bf16.msra.mxu0 0
    %151 = vmatprep.subr.bf16.mxu0 0
    %152 = vmatpush1.bf16.msra.mxu0 0
    %153 = vmatprep.subr.bf16.mxu0 0
    %154 = vmatpush1.bf16.msra.mxu0 0
    %155 = vmatprep.subr.bf16.mxu0 0
    %156 = vmatpush1.bf16.msra.mxu0 0
    %157 = vmatprep.subr.bf16.mxu0 0
    %158 = vmatpush1.bf16.msra.mxu0 0
    %159 = vmatprep.subr.bf16.mxu0 0
    %160 = vmatpush1.bf16.msra.mxu0 0
    %161 = vmatprep.subr.bf16.mxu0 %v134
    %162 = vmatpush1.bf16.msra.mxu0 %v133
    %163 = vmatprep.subr.bf16.mxu0 %v130
    %164 = vmatpush1.bf16.msra.mxu0 %v129
    %165 = vmatprep.subr.bf16.mxu0 0
    %166 = vmatpush2.bf16.msra.mxu0 0
    %167 = vmatprep.subr.bf16.mxu0 0
    %168 = vmatpush2.bf16.msra.mxu0 0
    %169 = vmatprep.subr.bf16.mxu0 0
    %170 = vmatpush2.bf16.msra.mxu0 0
    %171 = vmatprep.subr.bf16.mxu0 0
    %172 = vmatpush2.bf16.msra.mxu0 0
    %173 = vmatprep.subr.bf16.mxu0 0
    %174 = vmatpush2.bf16.msra.mxu0 0
    %175 = vmatprep.subr.bf16.mxu0 0
    %176 = vmatpush2.bf16.msra.mxu0 0
    %177 = vmatprep.subr.bf16.mxu0 0
    %178 = vmatpush2.bf16.msra.mxu0 0
    %179 = vmatprep.subr.bf16.mxu0 0
    %180 = vmatpush2.bf16.msra.mxu0 0
    %181 = vmatprep.mubr.bf16.mxu0 0
    %182 = vmatmul.mubr.bf16.gmra.mxu0 %v147
    %v183 = vpop.f32.mrf.mxu0
    %v184 = vadd.f32 %v88, %v183
    %v185 = vpop.f32.mrf.mxu0
    %v186 = vadd.f32 %v92, %v185
    %v187 = vpop.f32.mrf.mxu0
    %v188 = vpop.f32.mrf.mxu0
    %189 = vdwg.mxu0
    %190 = vmatprep.subr.bf16.mxu0 0
    %191 = vmatpush1.bf16.msra.mxu0 0
    %192 = vmatprep.subr.bf16.mxu0 0
    %193 = vmatpush1.bf16.msra.mxu0 0
    %194 = vmatprep.subr.bf16.mxu0 0
    %195 = vmatpush1.bf16.msra.mxu0 0
    %196 = vmatprep.subr.bf16.mxu0 0
    %197 = vmatpush1.bf16.msra.mxu0 0
    %198 = vmatprep.subr.bf16.mxu0 0
    %199 = vmatpush1.bf16.msra.mxu0 0
    %200 = vmatprep.subr.bf16.mxu0 0
    %201 = vmatpush1.bf16.msra.mxu0 0
    %202 = vmatprep.subr.bf16.mxu0 %v136
    %203 = vmatpush1.bf16.msra.mxu0 %v135
    %204 = vmatprep.subr.bf16.mxu0 %v132
    %205 = vmatpush1.bf16.msra.mxu0 %v131
    %206 = vmatprep.subr.bf16.mxu0 0
    %207 = vmatpush2.bf16.msra.mxu0 0
    %208 = vmatprep.subr.bf16.mxu0 0
    %209 = vmatpush2.bf16.msra.mxu0 0
    %210 = vmatprep.subr.bf16.mxu0 0
    %211 = vmatpush2.bf16.msra.mxu0 0
    %212 = vmatprep.subr.bf16.mxu0 0
    %213 = vmatpush2.bf16.msra.mxu0 0
    %214 = vmatprep.subr.bf16.mxu0 0
    %215 = vmatpush2.bf16.msra.mxu0 0
    %216 = vmatprep.subr.bf16.mxu0 0
    %217 = vmatpush2.bf16.msra.mxu0 0
    %218 = vmatprep.subr.bf16.mxu0 0
    %219 = vmatpush2.bf16.msra.mxu0 0
    %220 = vmatprep.subr.bf16.mxu0 0
    %221 = vmatpush2.bf16.msra.mxu0 0
    %222 = vmatprep.mubr.bf16.mxu0 0
    %223 = vmatmul.mubr.bf16.gmra.mxu0 %v147
    %v224 = vpop.f32.mrf.mxu0
    %v225 = vadd.f32 %v96, %v224
    %v226 = vpop.f32.mrf.mxu0
    %v227 = vadd.f32 %v100, %v226
    %v228 = vpop.f32.mrf.mxu0
    %v229 = vpop.f32.mrf.mxu0
    %230 = vdwg.mxu0
    %v231 = vmax.f32 %v184, 0.0
    %v232 = vmax.f32 %v186, 0.0
    %v233 = vmax.f32 %v225, 0.0
    %v234 = vmax.f32 %v227, 0.0
    %v235 = vpack.c.bf16 %v231, %v231
    %v236 = vpack.c.bf16 %v232, %v232
    %v237 = vpack.c.bf16 %v233, %v233
    %v238 = vpack.c.bf16 %v234, %v234
    %v239 = vld [vmem:[#allocation8] sm:$0xf]
    %v240 = vld [vmem:[#allocation8 + $0x4] sm:$0xf]
    %v241 = vld [vmem:[#allocation8 + $0x8] sm:$0xf]
    %v242 = vld [vmem:[#allocation8 + $0xc] sm:$0xf]
    %v243 = vld [vmem:[#allocation8 + $0x10] sm:$0xf]
    %v244 = vld [vmem:[#allocation8 + $0x14] sm:$0xf]
    %v245 = vld [vmem:[#allocation8 + $0x18] sm:$0xf]
    %v246 = vld [vmem:[#allocation8 + $0x1c] sm:$0xf]
    %v247 = vld [vmem:[#allocation8 + $0x20] sm:$0xf]
    %v248 = vld [vmem:[#allocation8 + $0x24] sm:$0xf]
    %v249 = vld [vmem:[#allocation8 + $0x28] sm:$0xf]
    %v250 = vld [vmem:[#allocation8 + $0x2c] sm:$0xf]
    %v251 = vld [vmem:[#allocation8 + $0x30] sm:$0xf]
    %v252 = vld [vmem:[#allocation8 + $0x34] sm:$0xf]
    %v253 = vld [vmem:[#allocation8 + $0x38] sm:$0xf]
    %v254 = vld [vmem:[#allocation8 + $0x3c] sm:$0xf]
    %v255 = vld [vmem:[#allocation8 + $0x40] sm:$0xf]
    %v256 = vld [vmem:[#allocation8 + $0x44] sm:$0xf]
    %v257 = vld [vmem:[#allocation8 + $0x48] sm:$0xf]
    %v258 = vld [vmem:[#allocation8 + $0x4c] sm:$0xf]
    %v259 = vld [vmem:[#allocation8 + $0x50] sm:$0xf]
    %v260 = vld [vmem:[#allocation8 + $0x54] sm:$0xf]
    %v261 = vld [vmem:[#allocation8 + $0x58] sm:$0xf]
    %v262 = vld [vmem:[#allocation8 + $0x5c] sm:$0xf]
    %v263 = vld [vmem:[#allocation8 + $0x60] sm:$0xf]
    %v264 = vld [vmem:[#allocation8 + $0x64] sm:$0xf]
    %v265 = vld [vmem:[#allocation8 + $0x68] sm:$0xf]
    %v266 = vld [vmem:[#allocation8 + $0x6c] sm:$0xf]
    %v267 = vld [vmem:[#allocation8 + $0x70] sm:$0xf]
    %v268 = vld [vmem:[#allocation8 + $0x74] sm:$0xf]
    %v269 = vld [vmem:[#allocation8 + $0x78] sm:$0xf]
    %v270 = vld [vmem:[#allocation8 + $0x7c] sm:$0xf]
    %v271 = vld [vmem:[#allocation8 + $0x80] sm:$0xf]
    %v272 = vld [vmem:[#allocation8 + $0x84] sm:$0xf]
    %v273 = vld [vmem:[#allocation8 + $0x88] sm:$0xf]
    %v274 = vld [vmem:[#allocation8 + $0x8c] sm:$0xf]
    %v275 = vld [vmem:[#allocation8 + $0x90] sm:$0xf]
    %v276 = vld [vmem:[#allocation8 + $0x94] sm:$0xf]
    %v277 = vld [vmem:[#allocation8 + $0x98] sm:$0xf]
    %v278 = vld [vmem:[#allocation8 + $0x9c] sm:$0xf]
    %v279 = vld [vmem:[#allocation8 + $0xa0] sm:$0xf]
    %v280 = vld [vmem:[#allocation8 + $0xa4] sm:$0xf]
    %v281 = vld [vmem:[#allocation8 + $0xa8] sm:$0xf]
    %v282 = vld [vmem:[#allocation8 + $0xac] sm:$0xf]
    %v283 = vld [vmem:[#allocation8 + $0xb0] sm:$0xf]
    %v284 = vld [vmem:[#allocation8 + $0xb4] sm:$0xf]
    %v285 = vld [vmem:[#allocation8 + $0xb8] sm:$0xf]
    %v286 = vld [vmem:[#allocation8 + $0xbc] sm:$0xf]
    %v287 = vld [vmem:[#allocation8 + $0xc0] sm:$0xf]
    %v288 = vld [vmem:[#allocation8 + $0xc4] sm:$0xf]
    %v289 = vld [vmem:[#allocation8 + $0xc8] sm:$0xf]
    %v290 = vld [vmem:[#allocation8 + $0xcc] sm:$0xf]
    %v291 = vld [vmem:[#allocation8 + $0xd0] sm:$0xf]
    %v292 = vld [vmem:[#allocation8 + $0xd4] sm:$0xf]
    %v293 = vld [vmem:[#allocation8 + $0xd8] sm:$0xf]
    %v294 = vld [vmem:[#allocation8 + $0xdc] sm:$0xf]
    %v295 = vld [vmem:[#allocation8 + $0xe0] sm:$0xf]
    %v296 = vld [vmem:[#allocation8 + $0xe4] sm:$0xf]
    %v297 = vld [vmem:[#allocation8 + $0xe8] sm:$0xf]
    %v298 = vld [vmem:[#allocation8 + $0xec] sm:$0xf]
    %v299 = vld [vmem:[#allocation8 + $0xf0] sm:$0xf]
    %v300 = vld [vmem:[#allocation8 + $0xf4] sm:$0xf]
    %v301 = vld [vmem:[#allocation8 + $0xf8] sm:$0xf]
    %v302 = vld [vmem:[#allocation8 + $0xfc] sm:$0xf]
    %v303 = vld [vmem:[%s4] sm:$0x1]
    %v305 = vlaneseq
    %v306 = vshrl.u32 %v305, 7
    %v307 = vsub.s32 0, %v306
    %v308 = vrot.slane %v303, %v307
    %v374 = vunpack.c.l.b16 %v239
    %v375 = vunpack.c.l.b16 %v240
    %v376 = vunpack.c.l.b16 %v241
    %v377 = vunpack.c.l.b16 %v242
    %v378 = vunpack.c.l.b16 %v243
    %v379 = vunpack.c.l.b16 %v244
    %v380 = vunpack.c.l.b16 %v245
    %v381 = vunpack.c.l.b16 %v246
    %v382 = vunpack.c.l.b16 %v247
    %v383 = vunpack.c.l.b16 %v248
    %v384 = vunpack.c.l.b16 %v249
    %v385 = vunpack.c.l.b16 %v250
    %v386 = vunpack.c.l.b16 %v251
    %v387 = vunpack.c.l.b16 %v252
    %v388 = vunpack.c.l.b16 %v253
    %v389 = vunpack.c.l.b16 %v254
    %v390 = vunpack.c.l.b16 %v255
    %v391 = vunpack.c.l.b16 %v256
    %v392 = vunpack.c.l.b16 %v257
    %v393 = vunpack.c.l.b16 %v258
    %v394 = vunpack.c.l.b16 %v259
    %v395 = vunpack.c.l.b16 %v260
    %v396 = vunpack.c.l.b16 %v261
    %v397 = vunpack.c.l.b16 %v262
    %v398 = vunpack.c.l.b16 %v263
    %v399 = vunpack.c.l.b16 %v264
    %v400 = vunpack.c.l.b16 %v265
    %v401 = vunpack.c.l.b16 %v266
    %v402 = vunpack.c.l.b16 %v267
    %v403 = vunpack.c.l.b16 %v268
    %v404 = vunpack.c.l.b16 %v269
    %v405 = vunpack.c.l.b16 %v270
    %v406 = vunpack.c.l.b16 %v271
    %v407 = vunpack.c.l.b16 %v272
    %v408 = vunpack.c.l.b16 %v273
    %v409 = vunpack.c.l.b16 %v274
    %v410 = vunpack.c.l.b16 %v275
    %v411 = vunpack.c.l.b16 %v276
    %v412 = vunpack.c.l.b16 %v277
    %v413 = vunpack.c.l.b16 %v278
    %v414 = vunpack.c.l.b16 %v279
    %v415 = vunpack.c.l.b16 %v280
    %v416 = vunpack.c.l.b16 %v281
    %v417 = vunpack.c.l.b16 %v282
    %v418 = vunpack.c.l.b16 %v283
    %v419 = vunpack.c.l.b16 %v284
    %v420 = vunpack.c.l.b16 %v285
    %v421 = vunpack.c.l.b16 %v286
    %v422 = vunpack.c.l.b16 %v287
    %v423 = vunpack.c.l.b16 %v288
    %v424 = vunpack.c.l.b16 %v289
    %v425 = vunpack.c.l.b16 %v290
    %v426 = vunpack.c.l.b16 %v291
    %v427 = vunpack.c.l.b16 %v292
    %v428 = vunpack.c.l.b16 %v293
    %v429 = vunpack.c.l.b16 %v294
    %v430 = vunpack.c.l.b16 %v295
    %v431 = vunpack.c.l.b16 %v296
    %v432 = vunpack.c.l.b16 %v297
    %v433 = vunpack.c.l.b16 %v298
    %v434 = vunpack.c.l.b16 %v299
    %v435 = vunpack.c.l.b16 %v300
    %v436 = vunpack.c.l.b16 %v301
    %v437 = vunpack.c.l.b16 %v302
    %v438 = vpack.c.b16 %v375, %v374
    %v439 = vpack.c.b16 %v377, %v376
    %v440 = vpack.c.b16 %v379, %v378
    %v441 = vpack.c.b16 %v381, %v380
    %v442 = vpack.c.b16 %v383, %v382
    %v443 = vpack.c.b16 %v385, %v384
    %v444 = vpack.c.b16 %v387, %v386
    %v445 = vpack.c.b16 %v389, %v388
    %v446 = vpack.c.b16 %v391, %v390
    %v447 = vpack.c.b16 %v393, %v392
    %v448 = vpack.c.b16 %v395, %v394
    %v449 = vpack.c.b16 %v397, %v396
    %v450 = vpack.c.b16 %v399, %v398
    %v451 = vpack.c.b16 %v401, %v400
    %v452 = vpack.c.b16 %v403, %v402
    %v453 = vpack.c.b16 %v405, %v404
    %v454 = vpack.c.b16 %v407, %v406
    %v455 = vpack.c.b16 %v409, %v408
    %v456 = vpack.c.b16 %v411, %v410
    %v457 = vpack.c.b16 %v413, %v412
    %v458 = vpack.c.b16 %v415, %v414
    %v459 = vpack.c.b16 %v417, %v416
    %v460 = vpack.c.b16 %v419, %v418
    %v461 = vpack.c.b16 %v421, %v420
    %v462 = vpack.c.b16 %v423, %v422
    %v463 = vpack.c.b16 %v425, %v424
    %v464 = vpack.c.b16 %v427, %v426
    %v465 = vpack.c.b16 %v429, %v428
    %v466 = vpack.c.b16 %v431, %v430
    %v467 = vpack.c.b16 %v433, %v432
    %v468 = vpack.c.b16 %v435, %v434
    %v469 = vpack.c.b16 %v437, %v436
    %502 = vmatprep.subr.bf16.mxu0 0
    %503 = vmatpush1.bf16.msra.mxu0 %v445
    %504 = vmatprep.subr.bf16.mxu0 0
    %505 = vmatpush1.bf16.msra.mxu0 %v444
    %506 = vmatprep.subr.bf16.mxu0 0
    %507 = vmatpush1.bf16.msra.mxu0 %v443
    %508 = vmatprep.subr.bf16.mxu0 0
    %509 = vmatpush1.bf16.msra.mxu0 %v442
    %510 = vmatprep.subr.bf16.mxu0 0
    %511 = vmatpush1.bf16.msra.mxu0 %v441
    %512 = vmatprep.subr.bf16.mxu0 0
    %513 = vmatpush1.bf16.msra.mxu0 %v440
    %514 = vmatprep.subr.bf16.mxu0 0
    %515 = vmatpush1.bf16.msra.mxu0 %v439
    %516 = vmatprep.subr.bf16.mxu0 0
    %517 = vmatpush1.bf16.msra.mxu0 %v438
    %518 = vmatprep.subr.bf16.mxu0 0
    %519 = vmatpush2.bf16.msra.mxu0 %v453
    %520 = vmatprep.subr.bf16.mxu0 0
    %521 = vmatpush2.bf16.msra.mxu0 %v452
    %522 = vmatprep.subr.bf16.mxu0 0
    %523 = vmatpush2.bf16.msra.mxu0 %v451
    %524 = vmatprep.subr.bf16.mxu0 0
    %525 = vmatpush2.bf16.msra.mxu0 %v450
    %526 = vmatprep.subr.bf16.mxu0 0
    %527 = vmatpush2.bf16.msra.mxu0 %v449
    %528 = vmatprep.subr.bf16.mxu0 0
    %529 = vmatpush2.bf16.msra.mxu0 %v448
    %530 = vmatprep.subr.bf16.mxu0 0
    %531 = vmatpush2.bf16.msra.mxu0 %v447
    %532 = vmatprep.subr.bf16.mxu0 0
    %533 = vmatpush2.bf16.msra.mxu0 %v446
    %534 = vmatprep.mubr.bf16.mxu0 %v236
    %535 = vmatmul.mubr.bf16.gmra.mxu0 %v235
    %v536 = vpop.f32.mrf.mxu0
    %v537 = vadd.f32 %v308, %v536
    %v538 = vpop.f32.mrf.mxu0
    %v539 = vpop.f32.mrf.mxu0
    %v540 = vpop.f32.mrf.mxu0
    %541 = vdwg.mxu0
    %542 = vmatprep.subr.bf16.mxu0 0
    %543 = vmatpush1.bf16.msra.mxu0 %v461
    %544 = vmatprep.subr.bf16.mxu0 0
    %545 = vmatpush1.bf16.msra.mxu0 %v460
    %546 = vmatprep.subr.bf16.mxu0 0
    %547 = vmatpush1.bf16.msra.mxu0 %v459
    %548 = vmatprep.subr.bf16.mxu0 0
    %549 = vmatpush1.bf16.msra.mxu0 %v458
    %550 = vmatprep.subr.bf16.mxu0 0
    %551 = vmatpush1.bf16.msra.mxu0 %v457
    %552 = vmatprep.subr.bf16.mxu0 0
    %553 = vmatpush1.bf16.msra.mxu0 %v456
    %554 = vmatprep.subr.bf16.mxu0 0
    %555 = vmatpush1.bf16.msra.mxu0 %v455
    %556 = vmatprep.subr.bf16.mxu0 0
    %557 = vmatpush1.bf16.msra.mxu0 %v454
    %558 = vmatprep.subr.bf16.mxu0 0
    %559 = vmatpush2.bf16.msra.mxu0 %v469
    %560 = vmatprep.subr.bf16.mxu0 0
    %561 = vmatpush2.bf16.msra.mxu0 %v468
    %562 = vmatprep.subr.bf16.mxu0 0
    %563 = vmatpush2.bf16.msra.mxu0 %v467
    %564 = vmatprep.subr.bf16.mxu0 0
    %565 = vmatpush2.bf16.msra.mxu0 %v466
    %566 = vmatprep.subr.bf16.mxu0 0
    %567 = vmatpush2.bf16.msra.mxu0 %v465
    %568 = vmatprep.subr.bf16.mxu0 0
    %569 = vmatpush2.bf16.msra.mxu0 %v464
    %570 = vmatprep.subr.bf16.mxu0 0
    %571 = vmatpush2.bf16.msra.mxu0 %v463
    %572 = vmatprep.subr.bf16.mxu0 0
    %573 = vmatpush2.bf16.msra.mxu0 %v462
    %574 = vmatprep.mubr.bf16.mxu0 %v238
    %575 = vmatmul.mubr.bf16.gmra.mxu0 %v237
    %v576 = vpop.f32.mrf.mxu0
    %v577 = vadd.f32 %v537, %v576
    %v578 = vpop.f32.mrf.mxu0
    %v579 = vpop.f32.mrf.mxu0
    %v580 = vpop.f32.mrf.mxu0
    %581 = vdwg.mxu0
    %582 = vst [vmem:[#allocation10] sm:$0xff] %v577
    // Predicated region
    $region38: #{tpu_custom_call.1} parent=1 // pred_check
      _
    $region39: #{tpu_custom_call.1} parent=1 // pred_check_branch
      %584 = sbr.rel (0) target = $region41
    $region40: #{tpu_custom_call.1} parent=1 // pred_region
      %s586 = ssub.s32 128, 128
      %587 = vsyncadd [#allocation4], %s586
      %s589 = sshll.u32 [#allocation10], 4
      %s590 = int_to_ptr.vmem [resolvable:$true] %s589
      %592 = dma.vmem_to_hbm [thread:$0]  %s590, 128, %s5, [#allocation4]
    $region41: #{tpu_custom_call.1} parent=1 // pred_fallthru
      _
    // Predicated region
    $region42: #{tpu_custom_call.1} parent=1 // pred_check
      _
    $region43: #{tpu_custom_call.1} parent=1 // pred_check_branch
      %594 = sbr.rel (0) target = $region45
    $region44: #{tpu_custom_call.1} parent=1 // pred_region
      %595 = dma.done [#allocation4], 128
    $region45: #{tpu_custom_call.1} parent=1 // pred_fallthru
      _
    %596 = vsyncpa [#allocation3], 1
    %597 = vsyncpa [#allocation6], 1
    %598 = vsyncpa [#allocation9], 1
    %599 = vsyncpa [#allocation4], 1

</llo_original>
